<compile_context>
chip_gen: v7x
topology: tpu7x:2x2x1
jax: 0.10.0
libtpu: 0.0.40
codegen_flags: <defaults>
</compile_context>

<pallas_src>
import jax
import jax.numpy as jnp
from jax.experimental import pallas as pl
from jax.experimental.pallas import tpu as pltpu


_ONE_SIXTH = 1.0 / 6.0


def _h_swish_kernel(x_ref, o_ref):
    x = x_ref[...]
    # torch: x * relu6(x + 3) / 6  ==  x * clamp(x + 3, 0, 6) * (1/6)
    o_ref[...] = (x * (jnp.clip(x + 3.0, 0.0, 6.0) * _ONE_SIXTH)).astype(o_ref.dtype)


def _block_bytes() -> int:
    """Per-block bytes tuned per TPU generation (mem-bound elementwise op)."""
    try:
        kind = jax.devices()[0].device_kind.lower()
    except Exception:
        kind = ""
    if "v7" in kind or "7x" in kind:
        return 8 * 1024 * 1024   # ~32 MiB resident (2 bufs x in+out); fits 64 MiB VMEM
    if "v6" in kind:
        return 4 * 1024 * 1024   # 16 MiB resident, under 32 MiB scoped default
    return 2 * 1024 * 1024       # v5e: 8 MiB resident, under 16 MiB scoped default


def _pick_cols(n: int, max_cols: int) -> int:
    """Column count (last dim) that divides n exactly (never pads).

    Prefers a lane-dense multiple of 128; otherwise the largest divisor of n
    (a full-extent last dim is always a legal BlockSpec). Degenerate prime
    sizes fall back to cols=1 (correct, just slow; irrelevant in practice).
    """
    for c in (2048, 1024, 512, 384, 256, 128):
        if c <= max_cols and n % c == 0:
            return c
    for c in range(min(n, max_cols, 65536), 0, -1):
        if n % c == 0:
            return c
    return 1


def h_swish(x: jax.Array) -> jax.Array:
    """Elementwise hard-swish, matching torch: x * relu6(x + 3) / 6."""
    orig_shape = x.shape
    dtype = x.dtype
    n = int(x.size)
    if n == 0:
        return x
    itemsize = jnp.dtype(dtype).itemsize
    block_bytes = _block_bytes()

    cols = _pick_cols(n, max_cols=block_bytes // itemsize)
    rows = n // cols
    x2d = x.reshape(rows, cols)  # contiguous reshape: free, no pad, no copy

    # dtype-aware sublane packing: 8 rows for 4-byte, 16 for bf16/f16, 32 for int8/fp8.
    sub = 8 * max(1, 4 // itemsize)
    # VMEM footprint uses lane-padded cols (relevant only for the degenerate ragged case).
    cols_pad = ((cols + 127) // 128) * 128
    target_rows = max(sub, block_bytes // (cols_pad * itemsize))
    if target_rows >= rows:
        tr = rows                                   # single block spans all rows
    else:
        tr = max(sub, (target_rows // sub) * sub)   # multiple of packing factor

    # For tensors > 512 KiB make sure there are >= 2 grid steps so the
    # "parallel" axis can shard across v7x's two TensorCores (harmless on v5e/v6e).
    if n * itemsize > 512 * 1024 and tr >= rows:
        half = ((rows + 1) // 2 + sub - 1) // sub * sub
        if half < rows:
            tr = half

    grid = (pl.cdiv(rows, tr),)

    vmem_limit = None
    if block_bytes > (2 << 20):
        # in + out, double-buffered, plus headroom.
        vmem_limit = max(32 << 20, 4 * block_bytes + (8 << 20))

    out = pl.pallas_call(
        _h_swish_kernel,
        out_shape=jax.ShapeDtypeStruct((rows, cols), dtype),
        grid_spec=pltpu.PrefetchScalarGridSpec(
            num_scalar_prefetch=0,
            grid=grid,
            in_specs=[pl.BlockSpec((tr, cols), lambda i: (i, 0))],
            out_specs=pl.BlockSpec((tr, cols), lambda i: (i, 0)),
        ),
        compiler_params=pltpu.CompilerParams(
            dimension_semantics=("parallel",),
            vmem_limit_bytes=vmem_limit,
        ),
        cost_estimate=pl.CostEstimate(
            flops=5 * n,
            transcendentals=0,
            bytes_accessed=2 * n * itemsize),
    )(x2d)

    return out.reshape(orig_shape)


if __name__ == "__main__":
    key = jax.random.PRNGKey(0)

    # Primary check: NCHW input consistent with the module (lane-aligned path).
    x = jax.random.normal(key, (2, 4, 16, 16), dtype=jnp.float32) * 4.0
    y = jax.block_until_ready(h_swish(x))
    y_ref = x * jnp.clip(x + 3.0, 0.0, 6.0) / 6.0
    assert y.shape == x.shape and y.dtype == x.dtype
    assert jnp.allclose(y, y_ref, atol=1e-5, rtol=1e-5), "mismatch (aligned path)"

    # Secondary check: ragged element count exercises the pad-free divisor path.
    x2 = jax.random.normal(jax.random.PRNGKey(1), (1, 3, 17, 17), dtype=jnp.float32) * 4.0
    y2 = jax.block_until_ready(h_swish(x2))
    y2_ref = x2 * jnp.clip(x2 + 3.0, 0.0, 6.0) / 6.0
    assert y2.shape == x2.shape and y2.dtype == x2.dtype
    assert jnp.allclose(y2, y2_ref, atol=1e-5, rtol=1e-5), "mismatch (ragged path)"

    print("KERNEL_OK")
</pallas_src>

<mosaic_0001>
module attributes {stable_mosaic.version = 11 : i64} {
  func.func @_h_swish_kernel(%arg0: i32, %arg1: memref<1x2048xf32, #tpu.memory_space<vmem>>, %arg2: memref<1x2048xf32, #tpu.memory_space<vmem>>) attributes {dimension_semantics = [#tpu.dimension_semantics<parallel>], iteration_bounds = array<i64: 1>, scalar_prefetch = 0 : i64, scratch_operands = 0 : i64, tpu.core_type = #tpu.core_type<tc>, window_params = [{transform_indices = @transform_0, window_bounds = array<i64: 1, 2048>}, {transform_indices = @transform_1, window_bounds = array<i64: 1, 2048>}]} {
    %c0 = arith.constant 0 : index
    %c0_0 = arith.constant 0 : index
    %0 = vector.load %arg1[%c0, %c0_0] : memref<1x2048xf32, #tpu.memory_space<vmem>>, vector<1x2048xf32>
    %cst = arith.constant 3.000000e+00 : f32
    %1 = vector.broadcast %cst : f32 to vector<1x2048xf32>
    %2 = arith.addf %0, %1 : vector<1x2048xf32>
    %cst_1 = arith.constant 0.000000e+00 : f32
    %cst_2 = arith.constant 6.000000e+00 : f32
    %3 = vector.broadcast %cst_1 : f32 to vector<1x2048xf32>
    %4 = arith.maximumf %3, %2 : vector<1x2048xf32>
    %5 = vector.broadcast %cst_2 : f32 to vector<1x2048xf32>
    %6 = arith.minimumf %5, %4 : vector<1x2048xf32>
    %cst_3 = arith.constant 0.166666672 : f32
    %7 = vector.broadcast %cst_3 : f32 to vector<1x2048xf32>
    %8 = arith.mulf %6, %7 : vector<1x2048xf32>
    %9 = arith.mulf %0, %8 : vector<1x2048xf32>
    %c0_4 = arith.constant 0 : index
    %c0_5 = arith.constant 0 : index
    %10 = vector.load %arg2[%c0_4, %c0_5] : memref<1x2048xf32, #tpu.memory_space<vmem>>, vector<1x2048xf32>
    tpu.vector_store %arg2[%c0_4, %c0_5], %9 {strides = array<i32>} : memref<1x2048xf32, #tpu.memory_space<vmem>>, vector<1x2048xf32>,
    return
  }
  func.func @transform_0(%arg0: i32) -> (i32, i32) {
    %c0_i32 = arith.constant 0 : i32
    %c0_i32_0 = arith.constant 0 : i32
    return %arg0, %c0_i32 : i32, i32
  }
  func.func @transform_1(%arg0: i32) -> (i32, i32) {
    %c0_i32 = arith.constant 0 : i32
    %c0_i32_0 = arith.constant 0 : i32
    return %arg0, %c0_i32 : i32, i32
  }
}

</mosaic_0001>

<llo_original>
// kernel: tpu_custom_call.1
$region0: #{tpu_custom_call.1}
  #allocation0 [shape = 'u32[]', space=smem, size = 0x4, offset = 0x4, fixed_abs, tag = 'smem constant byte address 0x4 - core index']
  #allocation1 [shape = 'u32[144,128]{1,0:T(1,128)}', space=vmem, size = 0x12000, scoped, tag = 'internal scratch']
  %s0 = inlined_call_operand.hbm [shape: f32[1,2048], index: 0, kind: input, shape index: {}]
  %s1 = inlined_call_operand.hbm [shape: f32[1,2048], index: 1, kind: output, shape index: {}]
  %s2 = sld [smem:[#allocation0]]
  $region18: #{tpu_custom_call.1} parent=0
    _
  %s4 = ssub.s32 1, %s2
  %s5 = scalar_select 0, %s4, %s2
  $region1: #{tpu_custom_call.1} parent=0
    #allocation2 [shape = 'u8[8192]{0}', space=vmem, size = 0x2000, scoped, tag = 'input window, operand 0, single buffered']
    #allocation3 [shape = 's32[1]{0}', space=sflag, size = 0x4, scoped, tag = 'scoped memory for tpu_custom_call.1']
    #allocation4 [shape = 's32[1]{0}', space=sflag, size = 0x4, scoped, tag = 'scoped memory for tpu_custom_call.1']
    #allocation5 [shape = 'u8[8192]{0}', space=vmem, size = 0x2000, scoped, tag = 'output window, operand 0, single buffered']
    %6 = vsyncpa [#allocation3], 0
    %7 = vsyncpa [#allocation4], 0
    // Predicated region
    $region2: #{tpu_custom_call.1} parent=1 // pred_check
      _
    $region3: #{tpu_custom_call.1} parent=1 // pred_check_branch
      %9 = sbr.rel (0) target = $region5
    $region4: #{tpu_custom_call.1} parent=1 // pred_region
      %s11 = ssub.s32 256, 256
      %12 = vsyncadd [#allocation3], %s11
      %s14 = sshll.u32 [#allocation2], 4
      %s15 = int_to_ptr.vmem [resolvable:$true] %s14
      %17 = dma.hbm_to_vmem [thread:$0]  %s0, 256, %s15, [#allocation3]
    $region5: #{tpu_custom_call.1} parent=1 // pred_fallthru
      _
    // Predicated region
    $region6: #{tpu_custom_call.1} parent=1 // pred_check
      _
    $region7: #{tpu_custom_call.1} parent=1 // pred_check_branch
      %19 = sbr.rel (0) target = $region9
    $region8: #{tpu_custom_call.1} parent=1 // pred_region
      %20 = dma.done [#allocation3], 256
    $region9: #{tpu_custom_call.1} parent=1 // pred_fallthru
      _
    %v21 = vld [vmem:[#allocation2] sm:$0xff]
    %v22 = vld [vmem:[#allocation2 + $0x8] sm:$0xff]
    %v23 = vadd.f32 %v21, 3.0
    %v24 = vadd.f32 %v22, 3.0
    %v25 = vmax.f32 %v23, 0.0
    %v26 = vmax.f32 %v24, 0.0
    %v27 = vmin.f32 %v25, 6.0
    %v28 = vmin.f32 %v26, 6.0
    %v29 = vmul.f32 %v27, 0.16666667
    %v30 = vmul.f32 %v28, 0.16666667
    %v31 = vmul.f32 %v21, %v29
    %v32 = vmul.f32 %v22, %v30
    %33 = vst [vmem:[#allocation5] sm:$0xff] %v31
    %34 = vst [vmem:[#allocation5 + $0x8] sm:$0xff] %v32
    // Predicated region
    $region10: #{tpu_custom_call.1} parent=1 // pred_check
      _
    $region11: #{tpu_custom_call.1} parent=1 // pred_check_branch
      %36 = sbr.rel (0) target = $region13
    $region12: #{tpu_custom_call.1} parent=1 // pred_region
      %s38 = ssub.s32 256, 256
      %39 = vsyncadd [#allocation4], %s38
      %s41 = sshll.u32 [#allocation5], 4
      %s42 = int_to_ptr.vmem [resolvable:$true] %s41
      %44 = dma.vmem_to_hbm [thread:$0]  %s42, 256, %s1, [#allocation4]
    $region13: #{tpu_custom_call.1} parent=1 // pred_fallthru
      _
    // Predicated region
    $region14: #{tpu_custom_call.1} parent=1 // pred_check
      _
    $region15: #{tpu_custom_call.1} parent=1 // pred_check_branch
      %46 = sbr.rel (0) target = $region17
    $region16: #{tpu_custom_call.1} parent=1 // pred_region
      %47 = dma.done [#allocation4], 256
    $region17: #{tpu_custom_call.1} parent=1 // pred_fallthru
      _
    %48 = vsyncpa [#allocation3], 1
    %49 = vsyncpa [#allocation4], 1

</llo_original>
